<compile_context>
chip_gen: v6e
topology: v6e:2x2x1
jax: 0.10.0
libtpu: 0.0.40
codegen_flags: <defaults>
</compile_context>

<pallas_src>
from functools import partial

import jax
import jax.numpy as jnp
from jax.experimental import pallas as pl
from jax.experimental.pallas import tpu as pltpu


def _round_up(x, m):
    return ((x + m - 1) // m) * m


def _query_vmem_capacity():
    """Per-core VMEM bytes; conservative 64 MiB (v7x) fallback."""
    try:
        info = pltpu.get_tpu_info()
        cap = getattr(info, "vmem_capacity_bytes", None)
        if cap:
            return int(cap)
    except Exception:
        pass
    return 64 * 1024 * 1024


# ---------------------------------------------------------------------------
# Kernel bodies
# ---------------------------------------------------------------------------
def _cross_core(cdt, xs_ref, xg_ref,
                w0a_ref, b0a_ref, w0b_ref, b0b_ref,
                w1a_ref, b1a_ref, w1b_ref, b1b_ref):
    """Cross-interaction scaling for one (tile_m, H) row tile.

    Inputs arrive in compute dtype (bf16 or f32); matmuls accumulate in f32.
    Returns the scaled f32 activations (xs * (tanh(<m0, xs>) + 1), ...).
    """
    xs = xs_ref[...]                               # (tile_m, H) compute dtype
    xg = xg_ref[...]
    xs32 = xs.astype(jnp.float32)
    xg32 = xg.astype(jnp.float32)

    # crossInteraction0(x_graph) = Linear -> ReLU -> Linear
    h0 = jnp.maximum(
        jnp.dot(xg, w0a_ref[...], preferred_element_type=jnp.float32)
        + b0a_ref[...], 0.0)
    m0 = (jnp.dot(h0.astype(cdt), w0b_ref[...], preferred_element_type=jnp.float32)
          + b0b_ref[...])
    # einsum('bij,bij->bi') row-dot -> tanh + 1   (XLU reduce + EUP tanh)
    ci0 = jnp.tanh(jnp.sum(m0 * xs32, axis=-1, keepdims=True)) + 1.0
    xs_s = xs32 * ci0

    # crossInteraction1(x_seq) = Linear -> ReLU -> Linear  (uses ORIGINAL xs/xg)
    h1 = jnp.maximum(
        jnp.dot(xs, w1a_ref[...], preferred_element_type=jnp.float32)
        + b1a_ref[...], 0.0)
    m1 = (jnp.dot(h1.astype(cdt), w1b_ref[...], preferred_element_type=jnp.float32)
          + b1b_ref[...])
    ci1 = jnp.tanh(jnp.sum(m1 * xg32, axis=-1, keepdims=True)) + 1.0
    xg_s = xg32 * ci1
    return xs_s, xg_s


def _cross_kernel_fused(cdt, xs_ref, xg_ref,
                        w0a_ref, b0a_ref, w0b_ref, b0b_ref,
                        w1a_ref, b1a_ref, w1b_ref, b1b_ref,
                        wl_ref, bl_ref, o_ref):
    """'seq_str_cross' with a single fused (tile_m, 2H) @ (2H, H) final dot (H < 256)."""
    xs_s, xg_s = _cross_core(cdt, xs_ref, xg_ref,
                             w0a_ref, b0a_ref, w0b_ref, b0b_ref,
                             w1a_ref, b1a_ref, w1b_ref, b1b_ref)
    x_cat = jnp.concatenate([xs_s, xg_s], axis=-1).astype(cdt)
    out = (jnp.dot(x_cat, wl_ref[...], preferred_element_type=jnp.float32)
           + bl_ref[...])
    o_ref[...] = out.astype(o_ref.dtype)


def _cross_kernel_split(cdt, xs_ref, xg_ref,
                        w0a_ref, b0a_ref, w0b_ref, b0b_ref,
                        w1a_ref, b1a_ref, w1b_ref, b1b_ref,
                        wls_ref, wlg_ref, bl_ref, o_ref):
    """'seq_str_cross' with the final 2H linear split into two (H, H) dots (H >= 256)."""
    xs_s, xg_s = _cross_core(cdt, xs_ref, xg_ref,
                             w0a_ref, b0a_ref, w0b_ref, b0b_ref,
                             w1a_ref, b1a_ref, w1b_ref, b1b_ref)
    out = (jnp.dot(xs_s.astype(cdt), wls_ref[...], preferred_element_type=jnp.float32)
           + jnp.dot(xg_s.astype(cdt), wlg_ref[...], preferred_element_type=jnp.float32)
           + bl_ref[...])
    o_ref[...] = out.astype(o_ref.dtype)


def _linear_kernel_fused(cdt, xs_ref, xg_ref, wl_ref, bl_ref, o_ref):
    """'seq_str_linear': cat + Linear(2H -> H) as one fused dot (H < 256)."""
    x_cat = jnp.concatenate([xs_ref[...], xg_ref[...]], axis=-1)
    out = (jnp.dot(x_cat, wl_ref[...], preferred_element_type=jnp.float32)
           + bl_ref[...])
    o_ref[...] = out.astype(o_ref.dtype)


def _linear_kernel_split(cdt, xs_ref, xg_ref, wls_ref, wlg_ref, bl_ref, o_ref):
    """'seq_str_linear': cat + Linear(2H -> H) split into two lane-aligned dots."""
    out = (jnp.dot(xs_ref[...], wls_ref[...], preferred_element_type=jnp.float32)
           + jnp.dot(xg_ref[...], wlg_ref[...], preferred_element_type=jnp.float32)
           + bl_ref[...])
    o_ref[...] = out.astype(o_ref.dtype)


# ---------------------------------------------------------------------------
# Wrapper module
# ---------------------------------------------------------------------------
class CrossInteractionPallas:
    def __init__(self, param, key, compute_dtype=jnp.bfloat16, fuse_final=None):
        self.H = param["hidden_dim"]
        self.modality = param["modality"]
        self.compute_dtype = compute_dtype
        H = self.H
        # Fuse the final 2H->H projection into one dot when K=2H still
        # under-fills the 256-deep MXU K dimension; split otherwise.
        self.fuse_final = (H < 256) if fuse_final is None else bool(fuse_final)
        self._vmem_cap = _query_vmem_capacity()

        ks = jax.random.split(key, 8)

        def init_linear(kw, kb, out_f, in_f):
            bound = 1.0 / jnp.sqrt(in_f)
            w = jax.random.uniform(kw, (out_f, in_f), jnp.float32, -bound, bound)
            b = jax.random.uniform(kb, (1, out_f), jnp.float32, -bound, bound)
            return w, b

        # self.linear : Linear(2H -> H)
        self.wl, self.bl = init_linear(ks[0], ks[1], H, 2 * H)
        # crossInteraction0 : Linear(H->H), ReLU, Linear(H->H)
        self.w0a, self.b0a = init_linear(ks[2], ks[3], H, H)
        self.w0b, self.b0b = init_linear(ks[4], ks[5], H, H)
        # crossInteraction1 : Linear(H->H), ReLU, Linear(H->H)
        self.w1a, self.b1a = init_linear(ks[6], ks[7], H, H)
        k2 = jax.random.split(jax.random.fold_in(key, 99), 2)
        self.w1b, self.b1b = init_linear(k2[0], k2[1], H, H)

        # ---- host-side pre-transposed / pre-split / pre-stacked weights ----
        cdt = compute_dtype
        self.w0a_t = jnp.asarray(self.w0a.T, cdt)             # (H, H)
        self.w0b_t = jnp.asarray(self.w0b.T, cdt)
        self.w1a_t = jnp.asarray(self.w1a.T, cdt)
        self.w1b_t = jnp.asarray(self.w1b.T, cdt)
        self.wl_t = jnp.asarray(self.wl.T, cdt)                # (2H, H) fused form
        self.wl_seq_t = jnp.asarray(self.wl[:, :H].T, cdt)     # (H, H) split form
        self.wl_graph_t = jnp.asarray(self.wl[:, H:].T, cdt)   # (H, H)
        # Biases stay f32 (added onto the f32 accumulators).

    # ---- flatten batch*seq into rows; pick a dtype-aware row tile ----------
    def _prep(self, x_seq, x_graph):
        B, L, H = x_seq.shape
        M = B * L
        # No host-side padding / slicing: Pallas handles the ragged last block
        # (rows are independent; out-of-range writes are dropped).
        xs = x_seq.reshape(M, H).astype(self.compute_dtype)
        xg = x_graph.reshape(M, H).astype(self.compute_dtype)
        g = 16 if jnp.dtype(self.compute_dtype) == jnp.dtype(jnp.bfloat16) else 8
        tile_cap = 1024 if self._vmem_cap >= 100 * 1024 * 1024 else 512
        # Aim for >= 2 grid steps so the "parallel" axis can shard across
        # v7x's two TensorCores, while keeping tiles large (amortize ~0.35us/step).
        tile_m = min(tile_cap, max(g, _round_up(-(-M // 2), g)))
        return xs, xg, B, L, H, M, tile_m

    def _compiler_params(self, H, tile_m):
        bpe = jnp.dtype(self.compute_dtype).itemsize
        # Weight/bias tiles are double-buffered by the default pipeline even
        # though their index_map is constant; activations (2 in, 1 out) are
        # double-buffered; ~8 live (tile_m, H) f32 intermediates in the body.
        w_bytes = 2 * (6 * H * H * bpe + 3 * H * 4)
        act_bytes = 2 * (2 * tile_m * H * bpe + tile_m * H * 4)
        tmp_bytes = 8 * tile_m * H * 4
        est = w_bytes + act_bytes + tmp_bytes
        cap = int(0.85 * self._vmem_cap)          # ~54 MiB on v7x, ~108 MiB on v5e/v6e
        limit = int(min(max(int(1.5 * est), 32 * 1024 * 1024), cap))
        return pltpu.CompilerParams(
            dimension_semantics=("parallel",),
            vmem_limit_bytes=limit)

    # ---- Pallas dispatch ----------------------------------------------------
    def _call_cross(self, x_seq, x_graph):
        xs, xg, B, L, H, M, tile_m = self._prep(x_seq, x_graph)
        grid = (pl.cdiv(M, tile_m),)
        x_spec = pl.BlockSpec((tile_m, H), lambda i: (i, 0))
        w_spec = pl.BlockSpec((H, H), lambda i: (0, 0))
        wl_spec = pl.BlockSpec((2 * H, H), lambda i: (0, 0))
        b_spec = pl.BlockSpec((1, H), lambda i: (0, 0))
        o_spec = pl.BlockSpec((tile_m, H), lambda i: (i, 0))
        bpe = jnp.dtype(self.compute_dtype).itemsize

        cost = pl.CostEstimate(
            flops=2 * M * 6 * H * H,
            transcendentals=2 * M,
            bytes_accessed=2 * M * H * bpe + M * H * 4 + 6 * H * H * bpe + 3 * H * 4)

        if self.fuse_final:
            kernel = partial(_cross_kernel_fused, self.compute_dtype)
            in_specs = [x_spec, x_spec,
                        w_spec, b_spec, w_spec, b_spec,
                        w_spec, b_spec, w_spec, b_spec,
                        wl_spec, b_spec]
            operands = (xs, xg,
                        self.w0a_t, self.b0a, self.w0b_t, self.b0b,
                        self.w1a_t, self.b1a, self.w1b_t, self.b1b,
                        self.wl_t, self.bl)
        else:
            kernel = partial(_cross_kernel_split, self.compute_dtype)
            in_specs = [x_spec, x_spec,
                        w_spec, b_spec, w_spec, b_spec,
                        w_spec, b_spec, w_spec, b_spec,
                        w_spec, w_spec, b_spec]
            operands = (xs, xg,
                        self.w0a_t, self.b0a, self.w0b_t, self.b0b,
                        self.w1a_t, self.b1a, self.w1b_t, self.b1b,
                        self.wl_seq_t, self.wl_graph_t, self.bl)

        out = pl.pallas_call(
            kernel,
            out_shape=jax.ShapeDtypeStruct((M, H), jnp.float32),
            grid=grid,
            in_specs=in_specs,
            out_specs=o_spec,
            compiler_params=self._compiler_params(H, tile_m),
            cost_estimate=cost,
        )(*operands)
        return out.reshape(B, L, H)

    def _call_linear(self, x_seq, x_graph):
        xs, xg, B, L, H, M, tile_m = self._prep(x_seq, x_graph)
        grid = (pl.cdiv(M, tile_m),)
        x_spec = pl.BlockSpec((tile_m, H), lambda i: (i, 0))
        w_spec = pl.BlockSpec((H, H), lambda i: (0, 0))
        wl_spec = pl.BlockSpec((2 * H, H), lambda i: (0, 0))
        b_spec = pl.BlockSpec((1, H), lambda i: (0, 0))
        o_spec = pl.BlockSpec((tile_m, H), lambda i: (i, 0))
        bpe = jnp.dtype(self.compute_dtype).itemsize

        cost = pl.CostEstimate(
            flops=2 * M * 2 * H * H,
            transcendentals=0,
            bytes_accessed=2 * M * H * bpe + M * H * 4 + 2 * H * H * bpe + H * 4)

        if self.fuse_final:
            kernel = partial(_linear_kernel_fused, self.compute_dtype)
            in_specs = [x_spec, x_spec, wl_spec, b_spec]
            operands = (xs, xg, self.wl_t, self.bl)
        else:
            kernel = partial(_linear_kernel_split, self.compute_dtype)
            in_specs = [x_spec, x_spec, w_spec, w_spec, b_spec]
            operands = (xs, xg, self.wl_seq_t, self.wl_graph_t, self.bl)

        out = pl.pallas_call(
            kernel,
            out_shape=jax.ShapeDtypeStruct((M, H), jnp.float32),
            grid=grid,
            in_specs=in_specs,
            out_specs=o_spec,
            compiler_params=self._compiler_params(H, tile_m),
            cost_estimate=cost,
        )(*operands)
        return out.reshape(B, L, H)

    def __call__(self, x_seq, x_graph):
        if self.modality == "seq_str_cross":
            return self._call_cross(x_seq, x_graph)
        elif self.modality == "seq_str_linear":
            return self._call_linear(x_seq, x_graph)
        elif self.modality == "sequence":
            return x_seq
        elif self.modality == "structure":
            return x_graph
        raise ValueError(self.modality)

    # ---- pure-JAX reference (mirrors the PyTorch forward, all f32) ----------
    def reference(self, x_seq, x_graph):
        def lin(x, w, b):
            return x @ w.T + b[0]

        if self.modality == "seq_str_cross":
            m0 = lin(jax.nn.relu(lin(x_graph, self.w0a, self.b0a)), self.w0b, self.b0b)
            m1 = lin(jax.nn.relu(lin(x_seq, self.w1a, self.b1a)), self.w1b, self.b1b)
            ci0 = jnp.tanh(jnp.einsum("bij,bij->bi", m0, x_seq)) + 1.0
            ci1 = jnp.tanh(jnp.einsum("bij,bij->bi", m1, x_graph)) + 1.0
            xs = jnp.einsum("bij,bi->bij", x_seq, ci0)
            xg = jnp.einsum("bij,bi->bij", x_graph, ci1)
            return lin(jnp.concatenate([xs, xg], axis=2), self.wl, self.bl)
        elif self.modality == "seq_str_linear":
            return lin(jnp.concatenate([x_seq, x_graph], axis=2), self.wl, self.bl)
        elif self.modality == "sequence":
            return x_seq
        elif self.modality == "structure":
            return x_graph


# ---------------------------------------------------------------------------
if __name__ == "__main__":
    B, L, H = 2, 8, 32
    key = jax.random.PRNGKey(0)
    k_seq, k_graph, k_params = jax.random.split(key, 3)

    x_seq = jax.random.normal(k_seq, (B, L, H), jnp.float32)
    x_graph = jax.random.normal(k_graph, (B, L, H), jnp.float32)

    p_cross = {"hidden_dim": H, "modality": "seq_str_cross"}
    p_lin = {"hidden_dim": H, "modality": "seq_str_linear"}

    # --- seq_str_cross, f32 compute: strict 1e-4 check (fused-final path) ----
    mod_f32 = CrossInteractionPallas(p_cross, k_params, compute_dtype=jnp.float32)
    out = jax.block_until_ready(mod_f32(x_seq, x_graph))
    ref = mod_f32.reference(x_seq, x_graph)
    assert out.shape == (B, L, H)
    assert jnp.allclose(out, ref, atol=1e-4, rtol=1e-4), \
        f"cross f32 max err {jnp.max(jnp.abs(out - ref))}"

    # --- seq_str_cross, f32 compute, split-final path (exercise H>=256 code) -
    mod_f32_split = CrossInteractionPallas(p_cross, k_params,
                                           compute_dtype=jnp.float32,
                                           fuse_final=False)
    out_s = jax.block_until_ready(mod_f32_split(x_seq, x_graph))
    ref_s = mod_f32_split.reference(x_seq, x_graph)
    assert jnp.allclose(out_s, ref_s, atol=1e-4, rtol=1e-4), \
        f"cross f32 split max err {jnp.max(jnp.abs(out_s - ref_s))}"

    # --- seq_str_cross, default bf16 compute: loose sanity check -------------
    mod_bf16 = CrossInteractionPallas(p_cross, k_params)   # bf16 default
    out_b = jax.block_until_ready(mod_bf16(x_seq, x_graph))
    ref_b = mod_bf16.reference(x_seq, x_graph)
    assert jnp.allclose(out_b, ref_b, atol=1e-1, rtol=1e-1), \
        f"cross bf16 max err {jnp.max(jnp.abs(out_b - ref_b))}"

    # --- seq_str_linear, f32 strict + bf16 loose ------------------------------
    mod_lin_f32 = CrossInteractionPallas(p_lin, k_params, compute_dtype=jnp.float32)
    out_l = jax.block_until_ready(mod_lin_f32(x_seq, x_graph))
    ref_l = mod_lin_f32.reference(x_seq, x_graph)
    assert jnp.allclose(out_l, ref_l, atol=1e-4, rtol=1e-4), \
        f"linear f32 max err {jnp.max(jnp.abs(out_l - ref_l))}"

    mod_lin_bf16 = CrossInteractionPallas(p_lin, k_params)
    out_lb = jax.block_until_ready(mod_lin_bf16(x_seq, x_graph))
    assert jnp.allclose(out_lb, ref_l, atol=1e-1, rtol=1e-1), \
        f"linear bf16 max err {jnp.max(jnp.abs(out_lb - ref_l))}"

    print("KERNEL_OK")
</pallas_src>

<mosaic_0001>
module attributes {stable_mosaic.version = 11 : i64} {
  func.func @_cross_kernel_fused(%arg0: i32, %arg1: memref<8x32xf32, #tpu.memory_space<vmem>>, %arg2: memref<8x32xf32, #tpu.memory_space<vmem>>, %arg3: memref<32x32xf32, #tpu.memory_space<vmem>>, %arg4: memref<1x32xf32, #tpu.memory_space<vmem>>, %arg5: memref<32x32xf32, #tpu.memory_space<vmem>>, %arg6: memref<1x32xf32, #tpu.memory_space<vmem>>, %arg7: memref<32x32xf32, #tpu.memory_space<vmem>>, %arg8: memref<1x32xf32, #tpu.memory_space<vmem>>, %arg9: memref<32x32xf32, #tpu.memory_space<vmem>>, %arg10: memref<1x32xf32, #tpu.memory_space<vmem>>, %arg11: memref<64x32xf32, #tpu.memory_space<vmem>>, %arg12: memref<1x32xf32, #tpu.memory_space<vmem>>, %arg13: memref<8x32xf32, #tpu.memory_space<vmem>>) attributes {dimension_semantics = [#tpu.dimension_semantics<parallel>], iteration_bounds = array<i64: 2>, scalar_prefetch = 0 : i64, scratch_operands = 0 : i64, tpu.core_type = #tpu.core_type<tc>, window_params = [{transform_indices = @transform_0, window_bounds = array<i64: 8, 32>}, {transform_indices = @transform_1, window_bounds = array<i64: 8, 32>}, {pipeline_mode = #tpu.pipeline_mode<synchronous>, transform_indices = @transform_2, window_bounds = array<i64: 32, 32>}, {pipeline_mode = #tpu.pipeline_mode<synchronous>, transform_indices = @transform_3, window_bounds = array<i64: 1, 32>}, {pipeline_mode = #tpu.pipeline_mode<synchronous>, transform_indices = @transform_4, window_bounds = array<i64: 32, 32>}, {pipeline_mode = #tpu.pipeline_mode<synchronous>, transform_indices = @transform_5, window_bounds = array<i64: 1, 32>}, {pipeline_mode = #tpu.pipeline_mode<synchronous>, transform_indices = @transform_6, window_bounds = array<i64: 32, 32>}, {pipeline_mode = #tpu.pipeline_mode<synchronous>, transform_indices = @transform_7, window_bounds = array<i64: 1, 32>}, {pipeline_mode = #tpu.pipeline_mode<synchronous>, transform_indices = @transform_8, window_bounds = array<i64: 32, 32>}, {pipeline_mode = #tpu.pipeline_mode<synchronous>, transform_indices = @transform_9, window_bounds = array<i64: 1, 32>}, {pipeline_mode = #tpu.pipeline_mode<synchronous>, transform_indices = @transform_10, window_bounds = array<i64: 64, 32>}, {pipeline_mode = #tpu.pipeline_mode<synchronous>, transform_indices = @transform_11, window_bounds = array<i64: 1, 32>}, {transform_indices = @transform_12, window_bounds = array<i64: 8, 32>}]} {
    %c0 = arith.constant 0 : index
    %c0_0 = arith.constant 0 : index
    %0 = vector.load %arg1[%c0, %c0_0] : memref<8x32xf32, #tpu.memory_space<vmem>>, vector<8x32xf32>
    %c0_1 = arith.constant 0 : index
    %c0_2 = arith.constant 0 : index
    %1 = vector.load %arg2[%c0_1, %c0_2] : memref<8x32xf32, #tpu.memory_space<vmem>>, vector<8x32xf32>
    %c0_3 = arith.constant 0 : index
    %c0_4 = arith.constant 0 : index
    %2 = vector.load %arg3[%c0_3, %c0_4] : memref<32x32xf32, #tpu.memory_space<vmem>>, vector<32x32xf32>
    %cst = arith.constant dense<0.000000e+00> : vector<8x32xf32>
    %3 = tpu.matmul %1, %2, %cst {dimension_numbers = #tpu.dot_dimension_numbers<[1], [0], [0], [1], [0, 0, 1, 1], [], []>} : vector<8x32xf32>, vector<32x32xf32>, vector<8x32xf32> -> vector<8x32xf32>
    %c0_5 = arith.constant 0 : index
    %c0_6 = arith.constant 0 : index
    %4 = vector.load %arg4[%c0_5, %c0_6] : memref<1x32xf32, #tpu.memory_space<vmem>>, vector<1x32xf32>
    %5 = vector.broadcast %4 : vector<1x32xf32> to vector<8x32xf32>
    %6 = arith.addf %3, %5 : vector<8x32xf32>
    %cst_7 = arith.constant 0.000000e+00 : f32
    %7 = vector.broadcast %cst_7 : f32 to vector<8x32xf32>
    %8 = arith.maximumf %6, %7 : vector<8x32xf32>
    %c0_8 = arith.constant 0 : index
    %c0_9 = arith.constant 0 : index
    %9 = vector.load %arg5[%c0_8, %c0_9] : memref<32x32xf32, #tpu.memory_space<vmem>>, vector<32x32xf32>
    %cst_10 = arith.constant dense<0.000000e+00> : vector<8x32xf32>
    %10 = tpu.matmul %8, %9, %cst_10 {dimension_numbers = #tpu.dot_dimension_numbers<[1], [0], [0], [1], [0, 0, 1, 1], [], []>} : vector<8x32xf32>, vector<32x32xf32>, vector<8x32xf32> -> vector<8x32xf32>
    %c0_11 = arith.constant 0 : index
    %c0_12 = arith.constant 0 : index
    %11 = vector.load %arg6[%c0_11, %c0_12] : memref<1x32xf32, #tpu.memory_space<vmem>>, vector<1x32xf32>
    %12 = vector.broadcast %11 : vector<1x32xf32> to vector<8x32xf32>
    %13 = arith.addf %10, %12 : vector<8x32xf32>
    %14 = arith.mulf %13, %0 : vector<8x32xf32>
    %cst_13 = arith.constant dense<0.000000e+00> : vector<8xf32>
    %15 = vector.multi_reduction <add>, %14, %cst_13 [1] : vector<8x32xf32> to vector<8xf32>
    %16 = vector.shape_cast %15 : vector<8xf32> to vector<8x1xf32>
    %17 = math.tanh %16 : vector<8x1xf32>
    %cst_14 = arith.constant 1.000000e+00 : f32
    %18 = vector.broadcast %cst_14 : f32 to vector<8x1xf32>
    %19 = arith.addf %17, %18 : vector<8x1xf32>
    %20 = vector.broadcast %19 : vector<8x1xf32> to vector<8x32xf32>
    %21 = arith.mulf %0, %20 : vector<8x32xf32>
    %c0_15 = arith.constant 0 : index
    %c0_16 = arith.constant 0 : index
    %22 = vector.load %arg7[%c0_15, %c0_16] : memref<32x32xf32, #tpu.memory_space<vmem>>, vector<32x32xf32>
    %cst_17 = arith.constant dense<0.000000e+00> : vector<8x32xf32>
    %23 = tpu.matmul %0, %22, %cst_17 {dimension_numbers = #tpu.dot_dimension_numbers<[1], [0], [0], [1], [0, 0, 1, 1], [], []>} : vector<8x32xf32>, vector<32x32xf32>, vector<8x32xf32> -> vector<8x32xf32>
    %c0_18 = arith.constant 0 : index
    %c0_19 = arith.constant 0 : index
    %24 = vector.load %arg8[%c0_18, %c0_19] : memref<1x32xf32, #tpu.memory_space<vmem>>, vector<1x32xf32>
    %25 = vector.broadcast %24 : vector<1x32xf32> to vector<8x32xf32>
    %26 = arith.addf %23, %25 : vector<8x32xf32>
    %cst_20 = arith.constant 0.000000e+00 : f32
    %27 = vector.broadcast %cst_20 : f32 to vector<8x32xf32>
    %28 = arith.maximumf %26, %27 : vector<8x32xf32>
    %c0_21 = arith.constant 0 : index
    %c0_22 = arith.constant 0 : index
    %29 = vector.load %arg9[%c0_21, %c0_22] : memref<32x32xf32, #tpu.memory_space<vmem>>, vector<32x32xf32>
    %cst_23 = arith.constant dense<0.000000e+00> : vector<8x32xf32>
    %30 = tpu.matmul %28, %29, %cst_23 {dimension_numbers = #tpu.dot_dimension_numbers<[1], [0], [0], [1], [0, 0, 1, 1], [], []>} : vector<8x32xf32>, vector<32x32xf32>, vector<8x32xf32> -> vector<8x32xf32>
    %c0_24 = arith.constant 0 : index
    %c0_25 = arith.constant 0 : index
    %31 = vector.load %arg10[%c0_24, %c0_25] : memref<1x32xf32, #tpu.memory_space<vmem>>, vector<1x32xf32>
    %32 = vector.broadcast %31 : vector<1x32xf32> to vector<8x32xf32>
    %33 = arith.addf %30, %32 : vector<8x32xf32>
    %34 = arith.mulf %33, %1 : vector<8x32xf32>
    %cst_26 = arith.constant dense<0.000000e+00> : vector<8xf32>
    %35 = vector.multi_reduction <add>, %34, %cst_26 [1] : vector<8x32xf32> to vector<8xf32>
    %36 = vector.shape_cast %35 : vector<8xf32> to vector<8x1xf32>
    %37 = math.tanh %36 : vector<8x1xf32>
    %cst_27 = arith.constant 1.000000e+00 : f32
    %38 = vector.broadcast %cst_27 : f32 to vector<8x1xf32>
    %39 = arith.addf %37, %38 : vector<8x1xf32>
    %40 = vector.broadcast %39 : vector<8x1xf32> to vector<8x32xf32>
    %41 = arith.mulf %1, %40 : vector<8x32xf32>
    %42 = tpu.concatenate %21, %41 in 1 : vector<8x32xf32>, vector<8x32xf32> -> vector<8x64xf32>
    %c0_28 = arith.constant 0 : index
    %c0_29 = arith.constant 0 : index
    %43 = vector.load %arg11[%c0_28, %c0_29] : memref<64x32xf32, #tpu.memory_space<vmem>>, vector<64x32xf32>
    %cst_30 = arith.constant dense<0.000000e+00> : vector<8x32xf32>
    %44 = tpu.matmul %42, %43, %cst_30 {dimension_numbers = #tpu.dot_dimension_numbers<[1], [0], [0], [1], [0, 0, 1, 1], [], []>} : vector<8x64xf32>, vector<64x32xf32>, vector<8x32xf32> -> vector<8x32xf32>
    %c0_31 = arith.constant 0 : index
    %c0_32 = arith.constant 0 : index
    %45 = vector.load %arg12[%c0_31, %c0_32] : memref<1x32xf32, #tpu.memory_space<vmem>>, vector<1x32xf32>
    %46 = vector.broadcast %45 : vector<1x32xf32> to vector<8x32xf32>
    %47 = arith.addf %44, %46 : vector<8x32xf32>
    %c0_33 = arith.constant 0 : index
    %c0_34 = arith.constant 0 : index
    %48 = vector.load %arg13[%c0_33, %c0_34] : memref<8x32xf32, #tpu.memory_space<vmem>>, vector<8x32xf32>
    tpu.vector_store %arg13[%c0_33, %c0_34], %47 {strides = array<i32>} : memref<8x32xf32, #tpu.memory_space<vmem>>, vector<8x32xf32>,
    return
  }
  func.func @transform_0(%arg0: i32) -> (i32, i32) {
    %c0_i32 = arith.constant 0 : i32
    %c0_i32_0 = arith.constant 0 : i32
    return %arg0, %c0_i32 : i32, i32
  }
  func.func @transform_1(%arg0: i32) -> (i32, i32) {
    %c0_i32 = arith.constant 0 : i32
    %c0_i32_0 = arith.constant 0 : i32
    return %arg0, %c0_i32 : i32, i32
  }
  func.func @transform_2(%arg0: i32) -> (i32, i32) {
    %c0_i32 = arith.constant 0 : i32
    %c0_i32_0 = arith.constant 0 : i32
    %c0_i32_1 = arith.constant 0 : i32
    return %c0_i32, %c0_i32_0 : i32, i32
  }
  func.func @transform_3(%arg0: i32) -> (i32, i32) {
    %c0_i32 = arith.constant 0 : i32
    %c0_i32_0 = arith.constant 0 : i32
    %c0_i32_1 = arith.constant 0 : i32
    return %c0_i32, %c0_i32_0 : i32, i32
  }
  func.func @transform_4(%arg0: i32) -> (i32, i32) {
    %c0_i32 = arith.constant 0 : i32
    %c0_i32_0 = arith.constant 0 : i32
    %c0_i32_1 = arith.constant 0 : i32
    return %c0_i32, %c0_i32_0 : i32, i32
  }
  func.func @transform_5(%arg0: i32) -> (i32, i32) {
    %c0_i32 = arith.constant 0 : i32
    %c0_i32_0 = arith.constant 0 : i32
    %c0_i32_1 = arith.constant 0 : i32
    return %c0_i32, %c0_i32_0 : i32, i32
  }
  func.func @transform_6(%arg0: i32) -> (i32, i32) {
    %c0_i32 = arith.constant 0 : i32
    %c0_i32_0 = arith.constant 0 : i32
    %c0_i32_1 = arith.constant 0 : i32
    return %c0_i32, %c0_i32_0 : i32, i32
  }
  func.func @transform_7(%arg0: i32) -> (i32, i32) {
    %c0_i32 = arith.constant 0 : i32
    %c0_i32_0 = arith.constant 0 : i32
    %c0_i32_1 = arith.constant 0 : i32
    return %c0_i32, %c0_i32_0 : i32, i32
  }
  func.func @transform_8(%arg0: i32) -> (i32, i32) {
    %c0_i32 = arith.constant 0 : i32
    %c0_i32_0 = arith.constant 0 : i32
    %c0_i32_1 = arith.constant 0 : i32
    return %c0_i32, %c0_i32_0 : i32, i32
  }
  func.func @transform_9(%arg0: i32) -> (i32, i32) {
    %c0_i32 = arith.constant 0 : i32
    %c0_i32_0 = arith.constant 0 : i32
    %c0_i32_1 = arith.constant 0 : i32
    return %c0_i32, %c0_i32_0 : i32, i32
  }
  func.func @transform_10(%arg0: i32) -> (i32, i32) {
    %c0_i32 = arith.constant 0 : i32
    %c0_i32_0 = arith.constant 0 : i32
    %c0_i32_1 = arith.constant 0 : i32
    return %c0_i32, %c0_i32_0 : i32, i32
  }
  func.func @transform_11(%arg0: i32) -> (i32, i32) {
    %c0_i32 = arith.constant 0 : i32
    %c0_i32_0 = arith.constant 0 : i32
    %c0_i32_1 = arith.constant 0 : i32
    return %c0_i32, %c0_i32_0 : i32, i32
  }
  func.func @transform_12(%arg0: i32) -> (i32, i32) {
    %c0_i32 = arith.constant 0 : i32
    %c0_i32_0 = arith.constant 0 : i32
    return %arg0, %c0_i32 : i32, i32
  }
}

</mosaic_0001>

<llo_original>
// kernel: tpu_custom_call.1
$region0: #{tpu_custom_call.1}
  #allocation0 [shape = 'u32[]', space=smem, size = 0x4, offset = 0x4, fixed_abs, tag = 'smem constant byte address 0x4 - core index']
  #allocation1 [shape = 'u32[144,128]{1,0:T(1,128)}', space=vmem, size = 0x12000, scoped, tag = 'internal scratch']
  %s0 = inlined_call_operand.hbm [shape: f32[16,32], index: 0, kind: input, shape index: {}]
  %s1 = inlined_call_operand.hbm [shape: f32[16,32], index: 1, kind: input, shape index: {}]
  %s2 = inlined_call_operand.vmem [shape: f32[32,32], index: 2, kind: input, shape index: {}]
  %s3 = inlined_call_operand.vmem [shape: f32[1,32], index: 3, kind: input, shape index: {}]
  %s4 = inlined_call_operand.vmem [shape: f32[32,32], index: 4, kind: input, shape index: {}]
  %s5 = inlined_call_operand.vmem [shape: f32[1,32], index: 5, kind: input, shape index: {}]
  %s6 = inlined_call_operand.vmem [shape: f32[32,32], index: 6, kind: input, shape index: {}]
  %s7 = inlined_call_operand.vmem [shape: f32[1,32], index: 7, kind: input, shape index: {}]
  %s8 = inlined_call_operand.hbm [shape: f32[32,32], index: 8, kind: input, shape index: {}]
  %s9 = inlined_call_operand.vmem [shape: f32[1,32], index: 9, kind: input, shape index: {}]
  %s10 = inlined_call_operand.vmem [shape: f32[64,32], index: 10, kind: input, shape index: {}]
  %s11 = inlined_call_operand.vmem [shape: f32[1,32], index: 11, kind: input, shape index: {}]
  %s12 = inlined_call_operand.hbm [shape: f32[16,32], index: 12, kind: output, shape index: {}]
  %s13 = sld [smem:[#allocation0]]
  $region93: #{tpu_custom_call.1} parent=0
    _
  %s15 = ssub.s32 1, %s13
  %s16 = scalar_select 0, %s15, %s13
  $region1: #{tpu_custom_call.1} parent=0
    #allocation2 [shape = 'u8[8192]{0}', space=vmem, size = 0x2000, scoped, tag = 'input window, operand 0']
    #allocation3 [shape = 's32[2]{0}', space=sflag, size = 0x8, scoped, tag = 'scoped memory for tpu_custom_call.1']
    #allocation4 [shape = 's32[2]{0}', space=sflag, size = 0x8, scoped, tag = 'scoped memory for tpu_custom_call.1']
    #allocation5 [shape = 'u8[8192]{0}', space=vmem, size = 0x2000, scoped, tag = 'input window, operand 1']
    #allocation6 [shape = 's32[2]{0}', space=sflag, size = 0x8, scoped, tag = 'scoped memory for tpu_custom_call.1']
    #allocation7 [shape = 'u8[16384]{0}', space=vmem, size = 0x4000, scoped, tag = 'input window, operand 8, single buffered']
    #allocation8 [shape = 'u8[8192]{0}', space=vmem, size = 0x2000, scoped, tag = 'output window, operand 0']
    %17 = vsyncpa [#allocation3], 0
    %s18 = scalar_lea.sflag [#allocation3], 1
    %19 = vsyncpa %s18, 0
    %20 = vsyncpa [#allocation6], 0
    %s21 = scalar_lea.sflag [#allocation6], 1
    %22 = vsyncpa %s21, 0
    %23 = vsyncpa [#allocation4], 0
    %s24 = scalar_lea.sflag [#allocation4], 1
    %25 = vsyncpa %s24, 0
    loop: start=0, step=1, limit=4
    $region2: #{tpu_custom_call.1} parent=1 // loop_pre_header
      _
    $region3: #{tpu_custom_call.1} parent=1 // loop_header
      %s27 = sphi 0, %s31
      %p28 = scmp.ge.s32.totalorder %s27, 4
      %s37 = sphi 0, %s39
      %s40 = sphi 0, %s37
      %s41 = sphi 0, %s40
      %s57 = sphi 0, %s41
      %s63 = sphi 0, %s65
      %s66 = sphi 0, %s63
      %s67 = sphi 0, %s66
      %s83 = sphi 0, %s67
      %s87 = sphi 0, %s87
      %s89 = sphi 0, %s87
      %s90 = sphi 0, %s89
      %s104 = sphi 0, %s90
      %s108 = sphi 0, %s108
      %s110 = sphi 0, %s108
      %s111 = sphi 0, %s110
      %s125 = sphi 0, %s111
      %s129 = sphi 0, %s129
      %s131 = sphi 0, %s129
      %s132 = sphi 0, %s131
      %s146 = sphi 0, %s132
      %s150 = sphi 0, %s150
      %s152 = sphi 0, %s150
      %s153 = sphi 0, %s152
      %s167 = sphi 0, %s153
      %s171 = sphi 0, %s171
      %s173 = sphi 0, %s171
      %s174 = sphi 0, %s173
      %s188 = sphi 0, %s174
      %s192 = sphi 0, %s192
      %s194 = sphi 0, %s192
      %s195 = sphi 0, %s194
      %s209 = sphi 0, %s195
      %s213 = sphi 0, %s213
      %s215 = sphi 0, %s213
      %s216 = sphi 0, %s215
      %s230 = sphi 0, %s216
      %s234 = sphi 0, %s234
      %s236 = sphi 0, %s234
      %s237 = sphi 0, %s236
      %s251 = sphi 0, %s237
      %s255 = sphi 0, %s255
      %s257 = sphi 0, %s255
      %s258 = sphi 0, %s257
      %s272 = sphi 0, %s258
      %s276 = sphi 0, %s276
      %s278 = sphi 0, %s276
      %s279 = sphi 0, %s278
      %s293 = sphi 0, %s279
      %s299 = sphi 0, %s301
      %s302 = sphi 0, %s299
      %s303 = sphi 0, %s302
      %s319 = sphi 0, %s303
    $region4: #{tpu_custom_call.1} parent=1 // loop_header_branch
      %30 = sbr.rel (%p28) target = $region8
    $region5: #{tpu_custom_call.1} parent=1 // loop_body
      %s32 = ssub.s32 %s27, 1
      %s33 = ssub.s32 %s27, 2
      %s34 = sadd.s32 %s27, 1
      %s35 = ssub.s32 %s27, %s34
      %p36 = scmp.eq.s32.totalorder %s35, 0
      %s38 = sadd.s32 %s37, 1
      %s39 = scalar_select %p36, %s37, %s38
      %p42 = pneg %p36
      %p43 = scmp.eq.s32.totalorder %s27, 1
      %p44 = por %p42, %p43
      %p45 = scmp.ne.s32.totalorder %s37, %s40
      %p46 = scmp.eq.s32.totalorder %s27, 0
      %p47 = por %p45, %p46
      %p48 = scmp.ne.s32.totalorder %s37, %s40
      %p49 = scmp.eq.s32.totalorder %s32, 1
      %p50 = por %p48, %p49
      %p51 = scmp.ne.s32.totalorder %s40, %s41
      %p52 = scmp.eq.s32.totalorder %s32, 0
      %p53 = por %p51, %p52
      %p54 = scmp.ne.s32.totalorder %s40, %s41
      %p55 = scmp.eq.s32.totalorder %s33, 1
      %p56 = por %p54, %p55
      %p58 = scmp.ne.s32.totalorder %s41, %s57
      %p59 = scmp.eq.s32.totalorder %s33, 0
      %p60 = por %p58, %p59
      %s61 = ssub.s32 %s27, %s34
      %p62 = scmp.eq.s32.totalorder %s61, 0
      %s64 = sadd.s32 %s63, 1
      %s65 = scalar_select %p62, %s63, %s64
      %p68 = pneg %p62
      %p69 = scmp.eq.s32.totalorder %s27, 1
      %p70 = por %p68, %p69
      %p71 = scmp.ne.s32.totalorder %s63, %s66
      %p72 = scmp.eq.s32.totalorder %s27, 0
      %p73 = por %p71, %p72
      %p74 = scmp.ne.s32.totalorder %s63, %s66
      %p75 = scmp.eq.s32.totalorder %s32, 1
      %p76 = por %p74, %p75
      %p77 = scmp.ne.s32.totalorder %s66, %s67
      %p78 = scmp.eq.s32.totalorder %s32, 0
      %p79 = por %p77, %p78
      %p80 = scmp.ne.s32.totalorder %s66, %s67
      %p81 = scmp.eq.s32.totalorder %s33, 1
      %p82 = por %p80, %p81
      %p84 = scmp.ne.s32.totalorder %s67, %s83
      %p85 = scmp.eq.s32.totalorder %s33, 0
      %p86 = por %p84, %p85
      %s88 = sadd.s32 %s87, 1
      %p91 = scmp.eq.s32.totalorder %s27, 1
      %p92 = scmp.ne.s32.totalorder %s87, %s89
      %p93 = scmp.eq.s32.totalorder %s27, 0
      %p94 = por %p92, %p93
      %p95 = scmp.ne.s32.totalorder %s87, %s89
      %p96 = scmp.eq.s32.totalorder %s32, 1
      %p97 = por %p95, %p96
      %p98 = scmp.ne.s32.totalorder %s89, %s90
      %p99 = scmp.eq.s32.totalorder %s32, 0
      %p100 = por %p98, %p99
      %p101 = scmp.ne.s32.totalorder %s89, %s90
      %p102 = scmp.eq.s32.totalorder %s33, 1
      %p103 = por %p101, %p102
      %p105 = scmp.ne.s32.totalorder %s90, %s104
      %p106 = scmp.eq.s32.totalorder %s33, 0
      %p107 = por %p105, %p106
      %s109 = sadd.s32 %s108, 1
      %p112 = scmp.eq.s32.totalorder %s27, 1
      %p113 = scmp.ne.s32.totalorder %s108, %s110
      %p114 = scmp.eq.s32.totalorder %s27, 0
      %p115 = por %p113, %p114
      %p116 = scmp.ne.s32.totalorder %s108, %s110
      %p117 = scmp.eq.s32.totalorder %s32, 1
      %p118 = por %p116, %p117
      %p119 = scmp.ne.s32.totalorder %s110, %s111
      %p120 = scmp.eq.s32.totalorder %s32, 0
      %p121 = por %p119, %p120
      %p122 = scmp.ne.s32.totalorder %s110, %s111
      %p123 = scmp.eq.s32.totalorder %s33, 1
      %p124 = por %p122, %p123
      %p126 = scmp.ne.s32.totalorder %s111, %s125
      %p127 = scmp.eq.s32.totalorder %s33, 0
      %p128 = por %p126, %p127
      %s130 = sadd.s32 %s129, 1
      %p133 = scmp.eq.s32.totalorder %s27, 1
      %p134 = scmp.ne.s32.totalorder %s129, %s131
      %p135 = scmp.eq.s32.totalorder %s27, 0
      %p136 = por %p134, %p135
      %p137 = scmp.ne.s32.totalorder %s129, %s131
      %p138 = scmp.eq.s32.totalorder %s32, 1
      %p139 = por %p137, %p138
      %p140 = scmp.ne.s32.totalorder %s131, %s132
      %p141 = scmp.eq.s32.totalorder %s32, 0
      %p142 = por %p140, %p141
      %p143 = scmp.ne.s32.totalorder %s131, %s132
      %p144 = scmp.eq.s32.totalorder %s33, 1
      %p145 = por %p143, %p144
      %p147 = scmp.ne.s32.totalorder %s132, %s146
      %p148 = scmp.eq.s32.totalorder %s33, 0
      %p149 = por %p147, %p148
      %s151 = sadd.s32 %s150, 1
      %p154 = scmp.eq.s32.totalorder %s27, 1
      %p155 = scmp.ne.s32.totalorder %s150, %s152
      %p156 = scmp.eq.s32.totalorder %s27, 0
      %p157 = por %p155, %p156
      %p158 = scmp.ne.s32.totalorder %s150, %s152
      %p159 = scmp.eq.s32.totalorder %s32, 1
      %p160 = por %p158, %p159
      %p161 = scmp.ne.s32.totalorder %s152, %s153
      %p162 = scmp.eq.s32.totalorder %s32, 0
      %p163 = por %p161, %p162
      %p164 = scmp.ne.s32.totalorder %s152, %s153
      %p165 = scmp.eq.s32.totalorder %s33, 1
      %p166 = por %p164, %p165
      %p168 = scmp.ne.s32.totalorder %s153, %s167
      %p169 = scmp.eq.s32.totalorder %s33, 0
      %p170 = por %p168, %p169
      %s172 = sadd.s32 %s171, 1
      %p175 = scmp.eq.s32.totalorder %s27, 1
      %p176 = scmp.ne.s32.totalorder %s171, %s173
      %p177 = scmp.eq.s32.totalorder %s27, 0
      %p178 = por %p176, %p177
      %p179 = scmp.ne.s32.totalorder %s171, %s173
      %p180 = scmp.eq.s32.totalorder %s32, 1
      %p181 = por %p179, %p180
      %p182 = scmp.ne.s32.totalorder %s173, %s174
      %p183 = scmp.eq.s32.totalorder %s32, 0
      %p184 = por %p182, %p183
      %p185 = scmp.ne.s32.totalorder %s173, %s174
      %p186 = scmp.eq.s32.totalorder %s33, 1
      %p187 = por %p185, %p186
      %p189 = scmp.ne.s32.totalorder %s174, %s188
      %p190 = scmp.eq.s32.totalorder %s33, 0
      %p191 = por %p189, %p190
      %s193 = sadd.s32 %s192, 1
      %p196 = scmp.eq.s32.totalorder %s27, 1
      %p197 = scmp.ne.s32.totalorder %s192, %s194
      %p198 = scmp.eq.s32.totalorder %s27, 0
      %p199 = por %p197, %p198
      %p200 = scmp.ne.s32.totalorder %s192, %s194
      %p201 = scmp.eq.s32.totalorder %s32, 1
      %p202 = por %p200, %p201
      %p203 = scmp.ne.s32.totalorder %s194, %s195
      %p204 = scmp.eq.s32.totalorder %s32, 0
      %p205 = por %p203, %p204
      %p206 = scmp.ne.s32.totalorder %s194, %s195
      %p207 = scmp.eq.s32.totalorder %s33, 1
      %p208 = por %p206, %p207
      %p210 = scmp.ne.s32.totalorder %s195, %s209
      %p211 = scmp.eq.s32.totalorder %s33, 0
      %p212 = por %p210, %p211
      %s214 = sadd.s32 %s213, 1
      %p217 = scmp.eq.s32.totalorder %s27, 1
      %p218 = scmp.ne.s32.totalorder %s213, %s215
      %p219 = scmp.eq.s32.totalorder %s27, 0
      %p220 = por %p218, %p219
      %p221 = scmp.ne.s32.totalorder %s213, %s215
      %p222 = scmp.eq.s32.totalorder %s32, 1
      %p223 = por %p221, %p222
      %p224 = scmp.ne.s32.totalorder %s215, %s216
      %p225 = scmp.eq.s32.totalorder %s32, 0
      %p226 = por %p224, %p225
      %p227 = scmp.ne.s32.totalorder %s215, %s216
      %p228 = scmp.eq.s32.totalorder %s33, 1
      %p229 = por %p227, %p228
      %p231 = scmp.ne.s32.totalorder %s216, %s230
      %p232 = scmp.eq.s32.totalorder %s33, 0
      %p233 = por %p231, %p232
      %s235 = sadd.s32 %s234, 1
      %p238 = scmp.eq.s32.totalorder %s27, 1
      %p239 = scmp.ne.s32.totalorder %s234, %s236
      %p240 = scmp.eq.s32.totalorder %s27, 0
      %p241 = por %p239, %p240
      %p242 = scmp.ne.s32.totalorder %s234, %s236
      %p243 = scmp.eq.s32.totalorder %s32, 1
      %p244 = por %p242, %p243
      %p245 = scmp.ne.s32.totalorder %s236, %s237
      %p246 = scmp.eq.s32.totalorder %s32, 0
      %p247 = por %p245, %p246
      %p248 = scmp.ne.s32.totalorder %s236, %s237
      %p249 = scmp.eq.s32.totalorder %s33, 1
      %p250 = por %p248, %p249
      %p252 = scmp.ne.s32.totalorder %s237, %s251
      %p253 = scmp.eq.s32.totalorder %s33, 0
      %p254 = por %p252, %p253
      %s256 = sadd.s32 %s255, 1
      %p259 = scmp.eq.s32.totalorder %s27, 1
      %p260 = scmp.ne.s32.totalorder %s255, %s257
      %p261 = scmp.eq.s32.totalorder %s27, 0
      %p262 = por %p260, %p261
      %p263 = scmp.ne.s32.totalorder %s255, %s257
      %p264 = scmp.eq.s32.totalorder %s32, 1
      %p265 = por %p263, %p264
      %p266 = scmp.ne.s32.totalorder %s257, %s258
      %p267 = scmp.eq.s32.totalorder %s32, 0
      %p268 = por %p266, %p267
      %p269 = scmp.ne.s32.totalorder %s257, %s258
      %p270 = scmp.eq.s32.totalorder %s33, 1
      %p271 = por %p269, %p270
      %p273 = scmp.ne.s32.totalorder %s258, %s272
      %p274 = scmp.eq.s32.totalorder %s33, 0
      %p275 = por %p273, %p274
      %s277 = sadd.s32 %s276, 1
      %p280 = scmp.eq.s32.totalorder %s27, 1
      %p281 = scmp.ne.s32.totalorder %s276, %s278
      %p282 = scmp.eq.s32.totalorder %s27, 0
      %p283 = por %p281, %p282
      %p284 = scmp.ne.s32.totalorder %s276, %s278
      %p285 = scmp.eq.s32.totalorder %s32, 1
      %p286 = por %p284, %p285
      %p287 = scmp.ne.s32.totalorder %s278, %s279
      %p288 = scmp.eq.s32.totalorder %s32, 0
      %p289 = por %p287, %p288
      %p290 = scmp.ne.s32.totalorder %s278, %s279
      %p291 = scmp.eq.s32.totalorder %s33, 1
      %p292 = por %p290, %p291
      %p294 = scmp.ne.s32.totalorder %s279, %s293
      %p295 = scmp.eq.s32.totalorder %s33, 0
      %p296 = por %p294, %p295
      %s297 = ssub.s32 %s27, %s34
      %p298 = scmp.eq.s32.totalorder %s297, 0
      %s300 = sadd.s32 %s299, 1
      %s301 = scalar_select %p298, %s299, %s300
      %p304 = pneg %p298
      %p305 = scmp.eq.s32.totalorder %s27, 1
      %p306 = por %p304, %p305
      %p307 = scmp.ne.s32.totalorder %s299, %s302
      %p308 = scmp.eq.s32.totalorder %s27, 0
      %p309 = por %p307, %p308
      %p310 = scmp.ne.s32.totalorder %s299, %s302
      %p311 = scmp.eq.s32.totalorder %s32, 1
      %p312 = por %p310, %p311
      %p313 = scmp.ne.s32.totalorder %s302, %s303
      %p314 = scmp.eq.s32.totalorder %s32, 0
      %p315 = por %p313, %p314
      %p316 = scmp.ne.s32.totalorder %s302, %s303
      %p317 = scmp.eq.s32.totalorder %s33, 1
      %p318 = por %p316, %p317
      %p320 = scmp.ne.s32.totalorder %s303, %s319
      %p321 = scmp.eq.s32.totalorder %s33, 0
      %p322 = por %p320, %p321
      %p323 = scmp.le.s32.totalorder 1, %s27
      %p324 = scmp.lt.s32.totalorder %s27, 3
      %p325 = pnand %p323, %p324
      %p326 = pneg %p325
      // Predicated region
      $region9: #{tpu_custom_call.1} parent=5 // pred_check
        _
      $region10: #{tpu_custom_call.1} parent=5 // pred_check_branch
        %328 = sbr.rel (%p325) target = $region12
      $region11: #{tpu_custom_call.1} parent=5 // pred_region
        %s329 = ssub.s32 %s27, 1
        // Predicated region
        $region13: #{tpu_custom_call.1} parent=11 // pred_check
          %p330 = pneg %p100
        $region14: #{tpu_custom_call.1} parent=11 // pred_check_branch
          %332 = sbr.rel (%p330) target = $region16
        $region15: #{tpu_custom_call.1} parent=11 // pred_region
          _
        $region16: #{tpu_custom_call.1} parent=11 // pred_fallthru
          _
        // Predicated region
        $region17: #{tpu_custom_call.1} parent=11 // pred_check
          %p333 = pneg %p121
        $region18: #{tpu_custom_call.1} parent=11 // pred_check_branch
          %335 = sbr.rel (%p333) target = $region20
        $region19: #{tpu_custom_call.1} parent=11 // pred_region
          _
        $region20: #{tpu_custom_call.1} parent=11 // pred_fallthru
          _
        // Predicated region
        $region21: #{tpu_custom_call.1} parent=11 // pred_check
          %p336 = pneg %p142
        $region22: #{tpu_custom_call.1} parent=11 // pred_check_branch
          %338 = sbr.rel (%p336) target = $region24
        $region23: #{tpu_custom_call.1} parent=11 // pred_region
          _
        $region24: #{tpu_custom_call.1} parent=11 // pred_fallthru
          _
        // Predicated region
        $region25: #{tpu_custom_call.1} parent=11 // pred_check
          %p339 = pneg %p163
        $region26: #{tpu_custom_call.1} parent=11 // pred_check_branch
          %341 = sbr.rel (%p339) target = $region28
        $region27: #{tpu_custom_call.1} parent=11 // pred_region
          _
        $region28: #{tpu_custom_call.1} parent=11 // pred_fallthru
          _
        // Predicated region
        $region29: #{tpu_custom_call.1} parent=11 // pred_check
          %p342 = pneg %p184
        $region30: #{tpu_custom_call.1} parent=11 // pred_check_branch
          %344 = sbr.rel (%p342) target = $region32
        $region31: #{tpu_custom_call.1} parent=11 // pred_region
          _
        $region32: #{tpu_custom_call.1} parent=11 // pred_fallthru
          _
        // Predicated region
        $region33: #{tpu_custom_call.1} parent=11 // pred_check
          %p345 = pneg %p205
        $region34: #{tpu_custom_call.1} parent=11 // pred_check_branch
          %347 = sbr.rel (%p345) target = $region36
        $region35: #{tpu_custom_call.1} parent=11 // pred_region
          _
        $region36: #{tpu_custom_call.1} parent=11 // pred_fallthru
          _
        // Predicated region
        $region37: #{tpu_custom_call.1} parent=11 // pred_check
          %p348 = pneg %p226
        $region38: #{tpu_custom_call.1} parent=11 // pred_check_branch
          %350 = sbr.rel (%p348) target = $region40
        $region39: #{tpu_custom_call.1} parent=11 // pred_region
          %s352 = ssub.s32 512, 512
          %353 = vsyncadd [#allocation6], %s352
          %s354 = sshll.u32 [#allocation7], 4
          %s355 = int_to_ptr.vmem [resolvable:$true] %s354
          %360 = dma.hbm_to_vmem [thread:$0]  %s8, 512, %s355, [#allocation6], 128, 128, 8
        $region40: #{tpu_custom_call.1} parent=11 // pred_fallthru
          _
        // Predicated region
        $region41: #{tpu_custom_call.1} parent=11 // pred_check
          %p361 = pneg %p247
        $region42: #{tpu_custom_call.1} parent=11 // pred_check_branch
          %363 = sbr.rel (%p361) target = $region44
        $region43: #{tpu_custom_call.1} parent=11 // pred_region
          _
        $region44: #{tpu_custom_call.1} parent=11 // pred_fallthru
          _
        // Predicated region
        $region45: #{tpu_custom_call.1} parent=11 // pred_check
          %p364 = pneg %p268
        $region46: #{tpu_custom_call.1} parent=11 // pred_check_branch
          %366 = sbr.rel (%p364) target = $region48
        $region47: #{tpu_custom_call.1} parent=11 // pred_region
          _
        $region48: #{tpu_custom_call.1} parent=11 // pred_fallthru
          _
        // Predicated region
        $region49: #{tpu_custom_call.1} parent=11 // pred_check
          %p367 = pneg %p289
        $region50: #{tpu_custom_call.1} parent=11 // pred_check_branch
          %369 = sbr.rel (%p367) target = $region52
        $region51: #{tpu_custom_call.1} parent=11 // pred_region
          _
        $region52: #{tpu_custom_call.1} parent=11 // pred_fallthru
          _
      $region12: #{tpu_custom_call.1} parent=5 // pred_fallthru
        _
      %p370 = scmp.lt.s32.totalorder %s27, 2
      // Predicated region
      $region53: #{tpu_custom_call.1} parent=5 // pred_check
        %p371 = pneg %p370
      $region54: #{tpu_custom_call.1} parent=5 // pred_check_branch
        %373 = sbr.rel (%p371) target = $region56
      $region55: #{tpu_custom_call.1} parent=5 // pred_region
        // Predicated region
        $region57: #{tpu_custom_call.1} parent=55 // pred_check
          %p374 = pneg %p47
        $region58: #{tpu_custom_call.1} parent=55 // pred_check_branch
          %376 = sbr.rel (%p374) target = $region60
        $region59: #{tpu_custom_call.1} parent=55 // pred_region
          %s377 = sand.u32 %s37, 1
          %s378 = scalar_lea.sflag [#allocation3], %s377
          %s379 = sand.u32 %s37, 1
          %s380 = smul.addr %s379, 8
          %s381 = scalar_lea.vmem [#allocation2], %s380
          %s383 = ssub.s32 128, 128
          %384 = vsyncadd %s378, %s383
          %s385 = smul.addr %s27, 128
          %s386 = scalar_lea.hbm %s0, %s385
          %s388 = sshll.u32 %s381, 4
          %s389 = int_to_ptr.vmem [resolvable:$true] %s388
          %391 = dma.hbm_to_vmem [thread:$0]  %s386, 128, %s389, %s378
        $region60: #{tpu_custom_call.1} parent=55 // pred_fallthru
          _
        // Predicated region
        $region61: #{tpu_custom_call.1} parent=55 // pred_check
          %p392 = pneg %p73
        $region62: #{tpu_custom_call.1} parent=55 // pred_check_branch
          %394 = sbr.rel (%p392) target = $region64
        $region63: #{tpu_custom_call.1} parent=55 // pred_region
          %s395 = sand.u32 %s27, 1
          %s396 = scalar_lea.sflag [#allocation6], %s395
          %s397 = sand.u32 %s63, 1
          %s398 = smul.addr %s397, 8
          %s399 = scalar_lea.vmem [#allocation5], %s398
          %s401 = ssub.s32 128, 128
          %402 = vsyncadd %s396, %s401
          %s403 = smul.addr %s27, 128
          %s404 = scalar_lea.hbm %s1, %s403
          %s406 = sshll.u32 %s399, 4
          %s407 = int_to_ptr.vmem [resolvable:$true] %s406
          %409 = dma.hbm_to_vmem [thread:$0]  %s404, 128, %s407, %s396
        $region64: #{tpu_custom_call.1} parent=55 // pred_fallthru
          _
      $region56: #{tpu_custom_call.1} parent=5 // pred_fallthru
        _
      %p410 = scmp.le.s32.totalorder 1, %s27
      %p411 = scmp.lt.s32.totalorder %s27, 3
      %p412 = pnand %p410, %p411
      %p413 = pneg %p412
      // Predicated region
      $region65: #{tpu_custom_call.1} parent=5 // pred_check
        _
      $region66: #{tpu_custom_call.1} parent=5 // pred_check_branch
        %415 = sbr.rel (%p412) target = $region68
      $region67: #{tpu_custom_call.1} parent=5 // pred_region
        %s416 = ssub.s32 %s27, 1
        %s417 = sand.u32 %s40, 1
        %s418 = scalar_lea.sflag [#allocation3], %s417
        %s419 = sand.u32 %s40, 1
        %s420 = smul.addr %s419, 8
        %s421 = scalar_lea.vmem [#allocation2], %s420
        // Predicated region
        $region69: #{tpu_custom_call.1} parent=67 // pred_check
          %p422 = pneg %p53
        $region70: #{tpu_custom_call.1} parent=67 // pred_check_branch
          %424 = sbr.rel (%p422) target = $region72
        $region71: #{tpu_custom_call.1} parent=67 // pred_region
          %425 = dma.done %s418, 128
        $region72: #{tpu_custom_call.1} parent=67 // pred_fallthru
          _
        %s426 = sand.u32 %s32, 1
        %s427 = scalar_lea.sflag [#allocation6], %s426
        %s428 = sand.u32 %s66, 1
        %s429 = smul.addr %s428, 8
        %s430 = scalar_lea.vmem [#allocation5], %s429
        // Predicated region
        $region73: #{tpu_custom_call.1} parent=67 // pred_check
          %p431 = pneg %p79
        $region74: #{tpu_custom_call.1} parent=67 // pred_check_branch
          %433 = sbr.rel (%p431) target = $region76
        $region75: #{tpu_custom_call.1} parent=67 // pred_region
          %434 = dma.done %s427, 128
        $region76: #{tpu_custom_call.1} parent=67 // pred_fallthru
          _
        // Predicated region
        $region77: #{tpu_custom_call.1} parent=67 // pred_check
          %p435 = pneg %p226
        $region78: #{tpu_custom_call.1} parent=67 // pred_check_branch
          %437 = sbr.rel (%p435) target = $region80
        $region79: #{tpu_custom_call.1} parent=67 // pred_region
          %438 = dma.done [#allocation6], 512
        $region80: #{tpu_custom_call.1} parent=67 // pred_fallthru
          _
        %s439 = sand.u32 %s40, 1
        %s440 = scalar_lea.sflag [#allocation3], %s439
        %s441 = sand.u32 %s40, 1
        %s442 = smul.addr %s441, 8
        %s443 = scalar_lea.vmem [#allocation2], %s442
        %p444 = pneg %p53
        %p445 = pneg %p50
        %s446 = sand.u32 %s32, 1
        %s447 = scalar_lea.sflag [#allocation6], %s446
        %s448 = sand.u32 %s66, 1
        %s449 = smul.addr %s448, 8
        %s450 = scalar_lea.vmem [#allocation5], %s449
        %p451 = pneg %p79
        %p452 = pneg %p76
        %p453 = pneg %p100
        %p454 = pneg %p97
        %p455 = pneg %p121
        %p456 = pneg %p118
        %p457 = pneg %p142
        %p458 = pneg %p139
        %p459 = pneg %p163
        %p460 = pneg %p160
        %p461 = pneg %p184
        %p462 = pneg %p181
        %p463 = pneg %p205
        %p464 = pneg %p202
        %p465 = pneg %p226
        %p466 = pneg %p223
        %p467 = pneg %p247
        %p468 = pneg %p244
        %p469 = pneg %p268
        %p470 = pneg %p265
        %p471 = pneg %p289
        %p472 = pneg %p286
        %p473 = pneg %p315
        %p474 = pneg %p312
        %s475 = sand.u32 %s302, 1
        %s476 = scalar_lea.sflag [#allocation4], %s475
        %s477 = sand.u32 %s302, 1
        %s478 = smul.addr %s477, 8
        %s479 = scalar_lea.vmem [#allocation8], %s478
        %v480 = vld [vmem:[%s421] sm:$0xff]
        %v481 = vld [vmem:[%s430] sm:$0xff]
        %v482 = vld [vmem:[%s2] sm:$0xff]
        %v483 = vld [vmem:[%s2 + $0x8] sm:$0xff]
        %v484 = vld [vmem:[%s2 + $0x10] sm:$0xff]
        %v485 = vld [vmem:[%s2 + $0x18] sm:$0xff]
        %v486 = vld [vmem:[%s3] sm:$0x1]
        %v488 = vlaneseq
        %v489 = vshrl.u32 %v488, 7
        %v490 = vsub.s32 0, %v489
        %v491 = vrot.slane %v486, %v490
        %vm493 = vcmask 261120
        %v495 = vsel %vm493, %v481, 0
        %497 = vmatprep.subr.mxu0 0.0
        %498 = vmatpush1.msra.mxu0 0.0
        %499 = vmatprep.subr.mxu0 0.0
        %500 = vmatpush1.msra.mxu0 0.0
        %501 = vmatprep.subr.mxu0 0.0
        %502 = vmatpush1.msra.mxu0 0.0
        %503 = vmatprep.subr.mxu0 0.0
        %504 = vmatpush1.msra.mxu0 0.0
        %505 = vmatprep.subr.mxu0 0.0
        %506 = vmatpush1.msra.mxu0 0.0
        %507 = vmatprep.subr.mxu0 0.0
        %508 = vmatpush1.msra.mxu0 0.0
        %509 = vmatprep.subr.mxu0 0.0
        %510 = vmatpush1.msra.mxu0 0.0
        %511 = vmatprep.subr.mxu0 0.0
        %512 = vmatpush1.msra.mxu0 0.0
        %513 = vmatprep.subr.mxu0 0.0
        %514 = vmatpush1.msra.mxu0 0.0
        %515 = vmatprep.subr.mxu0 0.0
        %516 = vmatpush1.msra.mxu0 0.0
        %517 = vmatprep.subr.mxu0 0.0
        %518 = vmatpush1.msra.mxu0 0.0
        %519 = vmatprep.subr.mxu0 0.0
        %520 = vmatpush1.msra.mxu0 0.0
        %521 = vmatprep.subr.mxu0 0.0
        %522 = vmatpush1.msra.mxu0 %v485
        %523 = vmatprep.subr.mxu0 0.0
        %524 = vmatpush1.msra.mxu0 %v484
        %525 = vmatprep.subr.mxu0 0.0
        %526 = vmatpush1.msra.mxu0 %v483
        %527 = vmatprep.subr.mxu0 0.0
        %528 = vmatpush1.msra.mxu0 %v482
        %529 = vmatprep.subr.mxu0 0.0
        %530 = vmatpush2.msra.mxu0 0.0
        %531 = vmatprep.subr.mxu0 0.0
        %532 = vmatpush2.msra.mxu0 0.0
        %533 = vmatprep.subr.mxu0 0.0
        %534 = vmatpush2.msra.mxu0 0.0
        %535 = vmatprep.subr.mxu0 0.0
        %536 = vmatpush2.msra.mxu0 0.0
        %537 = vmatprep.subr.mxu0 0.0
        %538 = vmatpush2.msra.mxu0 0.0
        %539 = vmatprep.subr.mxu0 0.0
        %540 = vmatpush2.msra.mxu0 0.0
        %541 = vmatprep.subr.mxu0 0.0
        %542 = vmatpush2.msra.mxu0 0.0
        %543 = vmatprep.subr.mxu0 0.0
        %544 = vmatpush2.msra.mxu0 0.0
        %545 = vmatprep.subr.mxu0 0.0
        %546 = vmatpush2.msra.mxu0 0.0
        %547 = vmatprep.subr.mxu0 0.0
        %548 = vmatpush2.msra.mxu0 0.0
        %549 = vmatprep.subr.mxu0 0.0
        %550 = vmatpush2.msra.mxu0 0.0
        %551 = vmatprep.subr.mxu0 0.0
        %552 = vmatpush2.msra.mxu0 0.0
        %553 = vmatprep.subr.mxu0 0.0
        %554 = vmatpush2.msra.mxu0 0.0
        %555 = vmatprep.subr.mxu0 0.0
        %556 = vmatpush2.msra.mxu0 0.0
        %557 = vmatprep.subr.mxu0 0.0
        %558 = vmatpush2.msra.mxu0 0.0
        %559 = vmatprep.subr.mxu0 0.0
        %560 = vmatpush2.msra.mxu0 0.0
        %561 = vmatprep.mubr.f32.mxu0 0.0
        %562 = vmatmul.mubr.f32.gmra.mxu0 %v495
        %v563 = vpop.f32.mrf.mxu0
        %v564 = vadd.f32 %v491, %v563
        %v565 = vpop.f32.mrf.mxu0
        %566 = vdwg.mxu0
        %v567 = vmax.f32 %v564, 0.0
        %v568 = vld [vmem:[%s4] sm:$0xff]
        %v569 = vld [vmem:[%s4 + $0x8] sm:$0xff]
        %v570 = vld [vmem:[%s4 + $0x10] sm:$0xff]
        %v571 = vld [vmem:[%s4 + $0x18] sm:$0xff]
        %v572 = vld [vmem:[%s5] sm:$0x1]
        %v574 = vlaneseq
        %v575 = vshrl.u32 %v574, 7
        %v576 = vsub.s32 0, %v575
        %v577 = vrot.slane %v572, %v576
        %v580 = vsel %vm493, %v567, 0
        %582 = vmatprep.subr.mxu0 0.0
        %583 = vmatpush1.msra.mxu0 0.0
        %584 = vmatprep.subr.mxu0 0.0
        %585 = vmatpush1.msra.mxu0 0.0
        %586 = vmatprep.subr.mxu0 0.0
        %587 = vmatpush1.msra.mxu0 0.0
        %588 = vmatprep.subr.mxu0 0.0
        %589 = vmatpush1.msra.mxu0 0.0
        %590 = vmatprep.subr.mxu0 0.0
        %591 = vmatpush1.msra.mxu0 0.0
        %592 = vmatprep.subr.mxu0 0.0
        %593 = vmatpush1.msra.mxu0 0.0
        %594 = vmatprep.subr.mxu0 0.0
        %595 = vmatpush1.msra.mxu0 0.0
        %596 = vmatprep.subr.mxu0 0.0
        %597 = vmatpush1.msra.mxu0 0.0
        %598 = vmatprep.subr.mxu0 0.0
        %599 = vmatpush1.msra.mxu0 0.0
        %600 = vmatprep.subr.mxu0 0.0
        %601 = vmatpush1.msra.mxu0 0.0
        %602 = vmatprep.subr.mxu0 0.0
        %603 = vmatpush1.msra.mxu0 0.0
        %604 = vmatprep.subr.mxu0 0.0
        %605 = vmatpush1.msra.mxu0 0.0
        %606 = vmatprep.subr.mxu0 0.0
        %607 = vmatpush1.msra.mxu0 %v571
        %608 = vmatprep.subr.mxu0 0.0
        %609 = vmatpush1.msra.mxu0 %v570
        %610 = vmatprep.subr.mxu0 0.0
        %611 = vmatpush1.msra.mxu0 %v569
        %612 = vmatprep.subr.mxu0 0.0
        %613 = vmatpush1.msra.mxu0 %v568
        %614 = vmatprep.subr.mxu0 0.0
        %615 = vmatpush2.msra.mxu0 0.0
        %616 = vmatprep.subr.mxu0 0.0
        %617 = vmatpush2.msra.mxu0 0.0
        %618 = vmatprep.subr.mxu0 0.0
        %619 = vmatpush2.msra.mxu0 0.0
        %620 = vmatprep.subr.mxu0 0.0
        %621 = vmatpush2.msra.mxu0 0.0
        %622 = vmatprep.subr.mxu0 0.0
        %623 = vmatpush2.msra.mxu0 0.0
        %624 = vmatprep.subr.mxu0 0.0
        %625 = vmatpush2.msra.mxu0 0.0
        %626 = vmatprep.subr.mxu0 0.0
        %627 = vmatpush2.msra.mxu0 0.0
        %628 = vmatprep.subr.mxu0 0.0
        %629 = vmatpush2.msra.mxu0 0.0
        %630 = vmatprep.subr.mxu0 0.0
        %631 = vmatpush2.msra.mxu0 0.0
        %632 = vmatprep.subr.mxu0 0.0
        %633 = vmatpush2.msra.mxu0 0.0
        %634 = vmatprep.subr.mxu0 0.0
        %635 = vmatpush2.msra.mxu0 0.0
        %636 = vmatprep.subr.mxu0 0.0
        %637 = vmatpush2.msra.mxu0 0.0
        %638 = vmatprep.subr.mxu0 0.0
        %639 = vmatpush2.msra.mxu0 0.0
        %640 = vmatprep.subr.mxu0 0.0
        %641 = vmatpush2.msra.mxu0 0.0
        %642 = vmatprep.subr.mxu0 0.0
        %643 = vmatpush2.msra.mxu0 0.0
        %644 = vmatprep.subr.mxu0 0.0
        %645 = vmatpush2.msra.mxu0 0.0
        %646 = vmatprep.mubr.f32.mxu0 0.0
        %647 = vmatmul.mubr.f32.gmra.mxu0 %v580
        %v648 = vpop.f32.mrf.mxu0
        %v649 = vadd.f32 %v577, %v648
        %v650 = vpop.f32.mrf.mxu0
        %651 = vdwg.mxu0
        %v652 = vmul.f32 %v649, %v480
        %v653 = vsel %vm493, %v652, 0.0
        %654 = vadd.xlane.f32.xlu0 %v653
        %v655 = vpop.xlane.xlu0 %654
        %v656 = vtanh.pop %v655
        %v657 = vadd.f32 %v656, 1.0
        %v658 = vmul.f32 %v480, %v657
        %v659 = vld [vmem:[%s6] sm:$0xff]
        %v660 = vld [vmem:[%s6 + $0x8] sm:$0xff]
        %v661 = vld [vmem:[%s6 + $0x10] sm:$0xff]
        %v662 = vld [vmem:[%s6 + $0x18] sm:$0xff]
        %v663 = vld [vmem:[%s7] sm:$0x1]
        %v665 = vlaneseq
        %v666 = vshrl.u32 %v665, 7
        %v667 = vsub.s32 0, %v666
        %v668 = vrot.slane %v663, %v667
        %v671 = vsel %vm493, %v480, 0
        %673 = vmatprep.subr.mxu0 0.0
        %674 = vmatpush1.msra.mxu0 0.0
        %675 = vmatprep.subr.mxu0 0.0
        %676 = vmatpush1.msra.mxu0 0.0
        %677 = vmatprep.subr.mxu0 0.0
        %678 = vmatpush1.msra.mxu0 0.0
        %679 = vmatprep.subr.mxu0 0.0
        %680 = vmatpush1.msra.mxu0 0.0
        %681 = vmatprep.subr.mxu0 0.0
        %682 = vmatpush1.msra.mxu0 0.0
        %683 = vmatprep.subr.mxu0 0.0
        %684 = vmatpush1.msra.mxu0 0.0
        %685 = vmatprep.subr.mxu0 0.0
        %686 = vmatpush1.msra.mxu0 0.0
        %687 = vmatprep.subr.mxu0 0.0
        %688 = vmatpush1.msra.mxu0 0.0
        %689 = vmatprep.subr.mxu0 0.0
        %690 = vmatpush1.msra.mxu0 0.0
        %691 = vmatprep.subr.mxu0 0.0
        %692 = vmatpush1.msra.mxu0 0.0
        %693 = vmatprep.subr.mxu0 0.0
        %694 = vmatpush1.msra.mxu0 0.0
        %695 = vmatprep.subr.mxu0 0.0
        %696 = vmatpush1.msra.mxu0 0.0
        %697 = vmatprep.subr.mxu0 0.0
        %698 = vmatpush1.msra.mxu0 %v662
        %699 = vmatprep.subr.mxu0 0.0
        %700 = vmatpush1.msra.mxu0 %v661
        %701 = vmatprep.subr.mxu0 0.0
        %702 = vmatpush1.msra.mxu0 %v660
        %703 = vmatprep.subr.mxu0 0.0
        %704 = vmatpush1.msra.mxu0 %v659
        %705 = vmatprep.subr.mxu0 0.0
        %706 = vmatpush2.msra.mxu0 0.0
        %707 = vmatprep.subr.mxu0 0.0
        %708 = vmatpush2.msra.mxu0 0.0
        %709 = vmatprep.subr.mxu0 0.0
        %710 = vmatpush2.msra.mxu0 0.0
        %711 = vmatprep.subr.mxu0 0.0
        %712 = vmatpush2.msra.mxu0 0.0
        %713 = vmatprep.subr.mxu0 0.0
        %714 = vmatpush2.msra.mxu0 0.0
        %715 = vmatprep.subr.mxu0 0.0
        %716 = vmatpush2.msra.mxu0 0.0
        %717 = vmatprep.subr.mxu0 0.0
        %718 = vmatpush2.msra.mxu0 0.0
        %719 = vmatprep.subr.mxu0 0.0
        %720 = vmatpush2.msra.mxu0 0.0
        %721 = vmatprep.subr.mxu0 0.0
        %722 = vmatpush2.msra.mxu0 0.0
        %723 = vmatprep.subr.mxu0 0.0
        %724 = vmatpush2.msra.mxu0 0.0
        %725 = vmatprep.subr.mxu0 0.0
        %726 = vmatpush2.msra.mxu0 0.0
        %727 = vmatprep.subr.mxu0 0.0
        %728 = vmatpush2.msra.mxu0 0.0
        %729 = vmatprep.subr.mxu0 0.0
        %730 = vmatpush2.msra.mxu0 0.0
        %731 = vmatprep.subr.mxu0 0.0
        %732 = vmatpush2.msra.mxu0 0.0
        %733 = vmatprep.subr.mxu0 0.0
        %734 = vmatpush2.msra.mxu0 0.0
        %735 = vmatprep.subr.mxu0 0.0
        %736 = vmatpush2.msra.mxu0 0.0
        %737 = vmatprep.mubr.f32.mxu0 0.0
        %738 = vmatmul.mubr.f32.gmra.mxu0 %v671
        %v739 = vpop.f32.mrf.mxu0
        %v740 = vadd.f32 %v668, %v739
        %v741 = vpop.f32.mrf.mxu0
        %742 = vdwg.mxu0
        %v743 = vmax.f32 %v740, 0.0
        %v744 = vld [vmem:[#allocation7] sm:$0xff]
        %v745 = vld [vmem:[#allocation7 + $0x8] sm:$0xff]
        %v746 = vld [vmem:[#allocation7 + $0x10] sm:$0xff]
        %v747 = vld [vmem:[#allocation7 + $0x18] sm:$0xff]
        %v748 = vld [vmem:[%s9] sm:$0x1]
        %v750 = vlaneseq
        %v751 = vshrl.u32 %v750, 7
        %v752 = vsub.s32 0, %v751
        %v753 = vrot.slane %v748, %v752
        %v756 = vsel %vm493, %v743, 0
        %758 = vmatprep.subr.mxu0 0.0
        %759 = vmatpush1.msra.mxu0 0.0
        %760 = vmatprep.subr.mxu0 0.0
        %761 = vmatpush1.msra.mxu0 0.0
        %762 = vmatprep.subr.mxu0 0.0
        %763 = vmatpush1.msra.mxu0 0.0
        %764 = vmatprep.subr.mxu0 0.0
        %765 = vmatpush1.msra.mxu0 0.0
        %766 = vmatprep.subr.mxu0 0.0
        %767 = vmatpush1.msra.mxu0 0.0
        %768 = vmatprep.subr.mxu0 0.0
        %769 = vmatpush1.msra.mxu0 0.0
        %770 = vmatprep.subr.mxu0 0.0
        %771 = vmatpush1.msra.mxu0 0.0
        %772 = vmatprep.subr.mxu0 0.0
        %773 = vmatpush1.msra.mxu0 0.0
        %774 = vmatprep.subr.mxu0 0.0
        %775 = vmatpush1.msra.mxu0 0.0
        %776 = vmatprep.subr.mxu0 0.0
        %777 = vmatpush1.msra.mxu0 0.0
        %778 = vmatprep.subr.mxu0 0.0
        %779 = vmatpush1.msra.mxu0 0.0
        %780 = vmatprep.subr.mxu0 0.0
        %781 = vmatpush1.msra.mxu0 0.0
        %782 = vmatprep.subr.mxu0 0.0
        %783 = vmatpush1.msra.mxu0 %v747
        %784 = vmatprep.subr.mxu0 0.0
        %785 = vmatpush1.msra.mxu0 %v746
        %786 = vmatprep.subr.mxu0 0.0
        %787 = vmatpush1.msra.mxu0 %v745
        %788 = vmatprep.subr.mxu0 0.0
        %789 = vmatpush1.msra.mxu0 %v744
        %790 = vmatprep.subr.mxu0 0.0
        %791 = vmatpush2.msra.mxu0 0.0
        %792 = vmatprep.subr.mxu0 0.0
        %793 = vmatpush2.msra.mxu0 0.0
        %794 = vmatprep.subr.mxu0 0.0
        %795 = vmatpush2.msra.mxu0 0.0
        %796 = vmatprep.subr.mxu0 0.0
        %797 = vmatpush2.msra.mxu0 0.0
        %798 = vmatprep.subr.mxu0 0.0
        %799 = vmatpush2.msra.mxu0 0.0
        %800 = vmatprep.subr.mxu0 0.0
        %801 = vmatpush2.msra.mxu0 0.0
        %802 = vmatprep.subr.mxu0 0.0
        %803 = vmatpush2.msra.mxu0 0.0
        %804 = vmatprep.subr.mxu0 0.0
        %805 = vmatpush2.msra.mxu0 0.0
        %806 = vmatprep.subr.mxu0 0.0
        %807 = vmatpush2.msra.mxu0 0.0
        %808 = vmatprep.subr.mxu0 0.0
        %809 = vmatpush2.msra.mxu0 0.0
        %810 = vmatprep.subr.mxu0 0.0
        %811 = vmatpush2.msra.mxu0 0.0
        %812 = vmatprep.subr.mxu0 0.0
        %813 = vmatpush2.msra.mxu0 0.0
        %814 = vmatprep.subr.mxu0 0.0
        %815 = vmatpush2.msra.mxu0 0.0
        %816 = vmatprep.subr.mxu0 0.0
        %817 = vmatpush2.msra.mxu0 0.0
        %818 = vmatprep.subr.mxu0 0.0
        %819 = vmatpush2.msra.mxu0 0.0
        %820 = vmatprep.subr.mxu0 0.0
        %821 = vmatpush2.msra.mxu0 0.0
        %822 = vmatprep.mubr.f32.mxu0 0.0
        %823 = vmatmul.mubr.f32.gmra.mxu0 %v756
        %v824 = vpop.f32.mrf.mxu0
        %v825 = vadd.f32 %v753, %v824
        %v826 = vpop.f32.mrf.mxu0
        %827 = vdwg.mxu0
        %v828 = vmul.f32 %v825, %v481
        %v829 = vsel %vm493, %v828, 0.0
        %830 = vadd.xlane.f32.xlu0 %v829
        %v831 = vpop.xlane.xlu0 %830
        %v832 = vtanh.pop %v831
        %v833 = vadd.f32 %v832, 1.0
        %v834 = vmul.f32 %v481, %v833
        %836 = vrot.lane.b32.xlu0 %v834, 32
        %v837 = vpop.permute.xlu0 %836
        %v839 = vsel %vm493, %v658, %v837
        %v840 = vld [vmem:[%s10] sm:$0xff]
        %v841 = vld [vmem:[%s10 + $0x8] sm:$0xff]
        %v842 = vld [vmem:[%s10 + $0x10] sm:$0xff]
        %v843 = vld [vmem:[%s10 + $0x18] sm:$0xff]
        %v844 = vld [vmem:[%s10 + $0x20] sm:$0xff]
        %v845 = vld [vmem:[%s10 + $0x28] sm:$0xff]
        %v846 = vld [vmem:[%s10 + $0x30] sm:$0xff]
        %v847 = vld [vmem:[%s10 + $0x38] sm:$0xff]
        %v848 = vld [vmem:[%s11] sm:$0x1]
        %v850 = vlaneseq
        %v851 = vshrl.u32 %v850, 7
        %v852 = vsub.s32 0, %v851
        %v853 = vrot.slane %v848, %v852
        %vm855 = vcmask 523264
        %v857 = vsel %vm855, %v839, 0
        %859 = vmatprep.subr.mxu0 0.0
        %860 = vmatpush1.msra.mxu0 0.0
        %861 = vmatprep.subr.mxu0 0.0
        %862 = vmatpush1.msra.mxu0 0.0
        %863 = vmatprep.subr.mxu0 0.0
        %864 = vmatpush1.msra.mxu0 0.0
        %865 = vmatprep.subr.mxu0 0.0
        %866 = vmatpush1.msra.mxu0 0.0
        %867 = vmatprep.subr.mxu0 0.0
        %868 = vmatpush1.msra.mxu0 0.0
        %869 = vmatprep.subr.mxu0 0.0
        %870 = vmatpush1.msra.mxu0 0.0
        %871 = vmatprep.subr.mxu0 0.0
        %872 = vmatpush1.msra.mxu0 0.0
        %873 = vmatprep.subr.mxu0 0.0
        %874 = vmatpush1.msra.mxu0 0.0
        %875 = vmatprep.subr.mxu0 0.0
        %876 = vmatpush1.msra.mxu0 %v847
        %877 = vmatprep.subr.mxu0 0.0
        %878 = vmatpush1.msra.mxu0 %v846
        %879 = vmatprep.subr.mxu0 0.0
        %880 = vmatpush1.msra.mxu0 %v845
        %881 = vmatprep.subr.mxu0 0.0
        %882 = vmatpush1.msra.mxu0 %v844
        %883 = vmatprep.subr.mxu0 0.0
        %884 = vmatpush1.msra.mxu0 %v843
        %885 = vmatprep.subr.mxu0 0.0
        %886 = vmatpush1.msra.mxu0 %v842
        %887 = vmatprep.subr.mxu0 0.0
        %888 = vmatpush1.msra.mxu0 %v841
        %889 = vmatprep.subr.mxu0 0.0
        %890 = vmatpush1.msra.mxu0 %v840
        %891 = vmatprep.subr.mxu0 0.0
        %892 = vmatpush2.msra.mxu0 0.0
        %893 = vmatprep.subr.mxu0 0.0
        %894 = vmatpush2.msra.mxu0 0.0
        %895 = vmatprep.subr.mxu0 0.0
        %896 = vmatpush2.msra.mxu0 0.0
        %897 = vmatprep.subr.mxu0 0.0
        %898 = vmatpush2.msra.mxu0 0.0
        %899 = vmatprep.subr.mxu0 0.0
        %900 = vmatpush2.msra.mxu0 0.0
        %901 = vmatprep.subr.mxu0 0.0
        %902 = vmatpush2.msra.mxu0 0.0
        %903 = vmatprep.subr.mxu0 0.0
        %904 = vmatpush2.msra.mxu0 0.0
        %905 = vmatprep.subr.mxu0 0.0
        %906 = vmatpush2.msra.mxu0 0.0
        %907 = vmatprep.subr.mxu0 0.0
        %908 = vmatpush2.msra.mxu0 0.0
        %909 = vmatprep.subr.mxu0 0.0
        %910 = vmatpush2.msra.mxu0 0.0
        %911 = vmatprep.subr.mxu0 0.0
        %912 = vmatpush2.msra.mxu0 0.0
        %913 = vmatprep.subr.mxu0 0.0
        %914 = vmatpush2.msra.mxu0 0.0
        %915 = vmatprep.subr.mxu0 0.0
        %916 = vmatpush2.msra.mxu0 0.0
        %917 = vmatprep.subr.mxu0 0.0
        %918 = vmatpush2.msra.mxu0 0.0
        %919 = vmatprep.subr.mxu0 0.0
        %920 = vmatpush2.msra.mxu0 0.0
        %921 = vmatprep.subr.mxu0 0.0
        %922 = vmatpush2.msra.mxu0 0.0
        %923 = vmatprep.mubr.f32.mxu0 0.0
        %924 = vmatmul.mubr.f32.gmra.mxu0 %v857
        %v925 = vpop.f32.mrf.mxu0
        %v926 = vadd.f32 %v853, %v925
        %v927 = vpop.f32.mrf.mxu0
        %928 = vdwg.mxu0
        %929 = vst.msk [vmem:[%s479] sm:$0xff] %vm493, %v926
        %s930 = sand.u32 %s302, 1
        %s931 = scalar_lea.sflag [#allocation4], %s930
        %s932 = sand.u32 %s302, 1
        %s933 = smul.addr %s932, 8
        %s934 = scalar_lea.vmem [#allocation8], %s933
        // Predicated region
        $region81: #{tpu_custom_call.1} parent=67 // pred_check
          %p935 = pneg %p312
        $region82: #{tpu_custom_call.1} parent=67 // pred_check_branch
          %937 = sbr.rel (%p935) target = $region84
        $region83: #{tpu_custom_call.1} parent=67 // pred_region
          %s939 = ssub.s32 128, 128
          %940 = vsyncadd %s931, %s939
          %s941 = smul.addr %s32, 128
          %s942 = scalar_lea.hbm %s12, %s941
          %s944 = sshll.u32 %s934, 4
          %s945 = int_to_ptr.vmem [resolvable:$true] %s944
          %947 = dma.vmem_to_hbm [thread:$0]  %s945, 128, %s942, %s931
        $region84: #{tpu_custom_call.1} parent=67 // pred_fallthru
          _
      $region68: #{tpu_custom_call.1} parent=5 // pred_fallthru
        _
      %p948 = scmp.le.s32.totalorder 2, %s27
      // Predicated region
      $region85: #{tpu_custom_call.1} parent=5 // pred_check
        %p949 = pneg %p948
      $region86: #{tpu_custom_call.1} parent=5 // pred_check_branch
        %951 = sbr.rel (%p949) target = $region88
      $region87: #{tpu_custom_call.1} parent=5 // pred_region
        %s952 = ssub.s32 %s27, 2
        // Predicated region
        $region89: #{tpu_custom_call.1} parent=87 // pred_check
          %p953 = pneg %p318
        $region90: #{tpu_custom_call.1} parent=87 // pred_check_branch
          %955 = sbr.rel (%p953) target = $region92
        $region91: #{tpu_custom_call.1} parent=87 // pred_region
          %s956 = sand.u32 %s303, 1
          %s957 = scalar_lea.sflag [#allocation4], %s956
          %s958 = sand.u32 %s303, 1
          %s959 = smul.addr %s958, 8
          %s960 = scalar_lea.vmem [#allocation8], %s959
          %961 = dma.done %s957, 128
        $region92: #{tpu_custom_call.1} parent=87 // pred_fallthru
          _
      $region88: #{tpu_custom_call.1} parent=5 // pred_fallthru
        _
    $region6: #{tpu_custom_call.1} parent=1 // loop_footer
      %s31 = sadd.s32 1, %s27
    $region7: #{tpu_custom_call.1} parent=1 // loop_footer_branch
      %26 = sbr.rel target = $region3
    $region8: #{tpu_custom_call.1} parent=1 // loop_exit
      _
    %962 = vsyncpa [#allocation3], 1
    %s963 = scalar_lea.sflag [#allocation3], 1
    %964 = vsyncpa %s963, 1
    %965 = vsyncpa [#allocation6], 1
    %s966 = scalar_lea.sflag [#allocation6], 1
    %967 = vsyncpa %s966, 1
    %968 = vsyncpa [#allocation4], 1
    %s969 = scalar_lea.sflag [#allocation4], 1
    %970 = vsyncpa %s969, 1

</llo_original>
